<compile_context>
chip_gen: v5e
topology: v5e:2x2
jax: 0.10.0
libtpu: 0.0.40
codegen_flags: <defaults>
</compile_context>

<pallas_src>
import functools
import math

import jax
import jax.numpy as jnp
from jax.experimental import pallas as pl
from jax.experimental.pallas import tpu as pltpu


def _round_up(x, m):
    return ((x + m - 1) // m) * m


# --------------------------------------------------------------------------- #
# Kernel body
# --------------------------------------------------------------------------- #
def _ffn_kernel(x_ref, w1_ref, b1_ref, w2_ref, b2_ref, o_ref, *scratch):
    # x_ref:  (tm, d_model_p)       w1_ref: (d_model_p, tff)   b1_ref: (1, tff) f32
    # w2_ref: (tff, d_model_p)      b2_ref: (1, d_model_p) f32
    # o_ref:  (tm, d_model_p)       scratch: () or (f32 (tm, d_model_p) acc,)
    acc_ref = scratch[0] if scratch else o_ref   # f32 output accumulates in place
    k = pl.program_id(1)

    # Fold b2 into the accumulator once, at the first d_ff chunk.
    @pl.when(k == 0)
    def _():
        acc_ref[...] = jnp.broadcast_to(b2_ref[...], acc_ref.shape)

    # First matmul: full d_model contraction for this d_ff chunk (MXU, f32 acc).
    h = jnp.dot(x_ref[...], w1_ref[...], preferred_element_type=jnp.float32)
    # Bias + ReLU in f32 on the VPU.
    h = jnp.maximum(h + b1_ref[...], 0.0)

    # Second matmul: accumulate this chunk's contribution in f32.
    acc_ref[...] += jnp.dot(h.astype(w2_ref.dtype), w2_ref[...],
                            preferred_element_type=jnp.float32)

    if scratch:  # narrow output dtype: cast out of the f32 scratch at the end
        @pl.when(k == pl.num_programs(1) - 1)
        def _():
            o_ref[...] = acc_ref[...].astype(o_ref.dtype)


# --------------------------------------------------------------------------- #
# Chip-aware defaults
# --------------------------------------------------------------------------- #
@functools.lru_cache(maxsize=1)
def _chip_config():
    """Return (vmem_limit_bytes, default_tm, default_tff, multi_tensorcore)."""
    vmem_bytes = None
    try:
        info = pltpu.get_tpu_info()
        vmem_bytes = getattr(info, "vmem_capacity_bytes", None)
    except Exception:
        vmem_bytes = None
    if vmem_bytes is None:
        vmem_bytes = 64 * 1024 * 1024  # conservative fallback (v7x-like)
    if vmem_bytes >= 100 * 1024 * 1024:
        # v5e / v6e: 128 MiB physical VMEM, single TensorCore per chip.
        return 100 * 1024 * 1024, 1024, 256, False
    # v7x-like: 64 MiB physical VMEM, two TensorCores share the chip.
    return 52 * 1024 * 1024, 512, 256, True


def _pick_tff(tff, d_ff_p):
    """Largest multiple of 128 that is <= tff and divides d_ff_p."""
    t = min(_round_up(tff, 128), d_ff_p)
    t = max(128, (t // 128) * 128)
    while d_ff_p % t != 0:
        t -= 128
    return t


def _fit_tm(tm, tff, d_model_p, in_bytes, w_bytes, out_bytes, use_scratch,
            row_align, vmem_limit):
    """Shrink tm until the rough VMEM working set fits the scoped budget."""
    def est(t):
        x_b = 2 * t * d_model_p * in_bytes          # x, double-buffered
        o_b = 2 * t * d_model_p * out_bytes         # out, double-buffered
        a_b = t * d_model_p * 4 if use_scratch else 0
        w_b = 4 * tff * d_model_p * w_bytes         # W1 + W2, double-buffered
        h_b = t * tff * 4                           # f32 hidden temporary
        return x_b + o_b + a_b + w_b + h_b
    while tm > row_align and est(tm) > int(0.85 * vmem_limit):
        tm = _round_up(max(tm // 2, row_align), row_align)
    return tm


# --------------------------------------------------------------------------- #
# Parameter preparation (runs ONCE at setup, not per forward call)
# --------------------------------------------------------------------------- #
def prepare_ffn_params(w1, b1, w2, b2, *, compute_dtype=None):
    """Cast + pad the FFN parameters once, outside the per-call hot path.

    w1: (d_model, d_ff), b1: (d_ff,), w2: (d_ff, d_model), b2: (d_model,).
    Weights are stored input-major so the kernel computes x @ W directly
    (equivalent to torch's x @ weight.T with weight of shape (out, in)).
    compute_dtype defaults to bf16 for f32 weights (f32 MXU accumulation,
    f32 bias + ReLU keep the documented bf16 accuracy path).
    """
    d_model, d_ff = w1.shape
    assert w2.shape == (d_ff, d_model)
    if compute_dtype is None:
        compute_dtype = jnp.bfloat16 if w1.dtype == jnp.float32 else w1.dtype

    d_model_p = _round_up(d_model, 128)
    d_ff_p = _round_up(d_ff, 128)

    def pad2(a, rows, cols):
        if a.shape == (rows, cols):
            return a
        return jnp.pad(a, ((0, rows - a.shape[0]), (0, cols - a.shape[1])))

    # Zero padding is exact: padded x cols hit zero W1 rows, padded hidden cols
    # hit zero W2 rows, padded bias entries are zero.
    w1_p = pad2(jnp.asarray(w1, compute_dtype), d_model_p, d_ff_p)
    w2_p = pad2(jnp.asarray(w2, compute_dtype), d_ff_p, d_model_p)
    b1_p = pad2(jnp.asarray(b1, jnp.float32).reshape(1, d_ff), 1, d_ff_p)
    b2_p = pad2(jnp.asarray(b2, jnp.float32).reshape(1, d_model), 1, d_model_p)
    return (w1_p, b1_p, w2_p, b2_p, int(d_model), int(d_ff))


# --------------------------------------------------------------------------- #
# Forward pass
# --------------------------------------------------------------------------- #
@functools.partial(jax.jit,
                   static_argnames=("d_model", "M_p", "tm", "tff", "vmem_limit"))
def _ffn_call(x, w1_p, b1_p, w2_p, b2_p, *, d_model, M_p, tm, tff, vmem_limit):
    lead = x.shape[:-1]
    M = math.prod(lead) if lead else 1
    d_model_p, d_ff_p = w1_p.shape
    compute_dtype = w1_p.dtype
    out_dtype = x.dtype
    use_scratch = out_dtype != jnp.float32

    x2 = x.reshape(M, d_model).astype(compute_dtype)
    if (M_p, d_model_p) != (M, d_model):
        x2 = jnp.pad(x2, ((0, M_p - M), (0, d_model_p - d_model)))

    grid = (M_p // tm, d_ff_p // tff)
    scratch_shapes = ([pltpu.VMEM((tm, d_model_p), jnp.float32)]
                      if use_scratch else [])

    out = pl.pallas_call(
        _ffn_kernel,
        out_shape=jax.ShapeDtypeStruct((M_p, d_model_p), out_dtype),
        grid_spec=pltpu.PrefetchScalarGridSpec(
            num_scalar_prefetch=0,
            grid=grid,
            in_specs=[
                pl.BlockSpec((tm, d_model_p), lambda i, k: (i, 0)),   # x
                pl.BlockSpec((d_model_p, tff), lambda i, k: (0, k)),  # W1 chunk
                pl.BlockSpec((1, tff), lambda i, k: (0, k)),          # b1 chunk
                pl.BlockSpec((tff, d_model_p), lambda i, k: (k, 0)),  # W2 chunk
                pl.BlockSpec((1, d_model_p), lambda i, k: (0, 0)),    # b2
            ],
            out_specs=pl.BlockSpec((tm, d_model_p), lambda i, k: (i, 0)),
            scratch_shapes=scratch_shapes,
        ),
        compiler_params=pltpu.CompilerParams(
            dimension_semantics=("parallel", "arbitrary"),
            vmem_limit_bytes=int(vmem_limit),
        ),
    )(x2, w1_p, b1_p, w2_p, b2_p)

    return out[:M, :d_model].reshape(*lead, d_model)


def feed_forward(x, params, *, tm=None, tff=None):
    """FF(x) = max(0, x @ W1 + b1) @ W2 + b2.

    x:      (..., d_model), any leading dims (e.g. (batch, seq, d_model)).
    params: result of prepare_ffn_params (pre-cast, pre-padded weights).
    tm/tff: optional tile overrides; defaults are chosen per TPU generation.
    Output keeps x.dtype; MXU accumulation is always f32.
    """
    w1_p, b1_p, w2_p, b2_p, d_model, d_ff = params
    assert x.shape[-1] == d_model, "x feature dim must equal d_model"
    lead = x.shape[:-1]
    M = math.prod(lead) if lead else 1

    d_model_p, d_ff_p = w1_p.shape
    compute_dtype = w1_p.dtype
    out_dtype = x.dtype

    vmem_limit, tm_default, tff_default, multi_tc = _chip_config()
    tm = tm_default if tm is None else tm
    tff = tff_default if tff is None else tff

    # bf16 x blocks pack (16,128) sublanes; f32 needs multiples of 8.
    row_align = 16 if jnp.dtype(compute_dtype).itemsize < 4 else 8
    tff_eff = _pick_tff(tff, d_ff_p)

    # Balance row tiles (avoids padding odd M up to a whole oversized tile) and
    # on multi-TensorCore chips give the "parallel" row axis >= 2 tiles.
    num_tiles = max(1, pl.cdiv(M, tm))
    if multi_tc and num_tiles < 2 and M > row_align:
        num_tiles = 2
    tm_eff = _round_up(pl.cdiv(M, num_tiles), row_align)

    use_scratch = out_dtype != jnp.float32
    in_bytes = jnp.dtype(compute_dtype).itemsize
    out_bytes = jnp.dtype(out_dtype).itemsize
    tm_eff = _fit_tm(tm_eff, tff_eff, d_model_p, in_bytes, in_bytes, out_bytes,
                     use_scratch, row_align, vmem_limit)

    M_p = pl.cdiv(M, tm_eff) * tm_eff

    return _ffn_call(x, w1_p, b1_p, w2_p, b2_p,
                     d_model=d_model, M_p=int(M_p), tm=int(tm_eff),
                     tff=int(tff_eff), vmem_limit=int(vmem_limit))


# --------------------------------------------------------------------------- #
# Init helpers + self-test
# --------------------------------------------------------------------------- #
def _xavier_uniform(key, fan_in, fan_out, dtype=jnp.float32):
    bound = (6.0 / (fan_in + fan_out)) ** 0.5
    # Stored as (fan_in, fan_out) so the kernel computes x @ W directly
    # (equivalent to torch's x @ weight.T with weight of shape (out, in)).
    return jax.random.uniform(key, (fan_in, fan_out), dtype,
                              minval=-bound, maxval=bound)


if __name__ == "__main__":
    # Small config consistent with the module: (batch, seq, d_model), d_ff.
    B, S, d_model, d_ff = 2, 8, 32, 64

    key = jax.random.PRNGKey(0)
    kx, k1, k2, kb1, kb2 = jax.random.split(key, 5)

    x = jax.random.normal(kx, (B, S, d_model), dtype=jnp.float32)
    w1 = _xavier_uniform(k1, d_model, d_ff)          # Linear(d_model -> d_ff)
    b1 = jnp.zeros((d_ff,), jnp.float32)
    w2 = _xavier_uniform(k2, d_ff, d_model)          # Linear(d_ff -> d_model)
    b2 = jnp.zeros((d_model,), jnp.float32)

    # Pure-JAX reference: FF(x) = max(0, x W1 + b1) W2 + b2.
    ref = jnp.maximum(x @ w1 + b1, 0.0) @ w2 + b2

    # 1) Exact f32 compute path.
    params_f32 = prepare_ffn_params(w1, b1, w2, b2, compute_dtype=jnp.float32)
    out = jax.block_until_ready(feed_forward(x, params_f32))
    assert out.shape == (B, S, d_model)
    assert jnp.allclose(out, ref, atol=1e-5, rtol=1e-5)

    # 2) Non-zero biases (same shapes -> same compiled kernel) verify b1/b2 path.
    b1_r = 0.1 * jax.random.normal(kb1, (d_ff,), jnp.float32)
    b2_r = 0.1 * jax.random.normal(kb2, (d_model,), jnp.float32)
    params_bias = prepare_ffn_params(w1, b1_r, w2, b2_r,
                                     compute_dtype=jnp.float32)
    ref_bias = jnp.maximum(x @ w1 + b1_r, 0.0) @ w2 + b2_r
    out_bias = jax.block_until_ready(feed_forward(x, params_bias))
    assert jnp.allclose(out_bias, ref_bias, atol=1e-5, rtol=1e-5)

    # 3) Default production path: bf16 compute, f32 accumulation, f32 output
    #    (accumulates directly in the resident output block, no scratch).
    params = prepare_ffn_params(w1, b1, w2, b2)
    out_bf16 = jax.block_until_ready(feed_forward(x, params))
    assert out_bf16.shape == (B, S, d_model)
    assert out_bf16.dtype == jnp.float32
    assert jnp.allclose(out_bf16, ref, atol=5e-2, rtol=5e-2)

    # 4) bf16 input/output exercises the f32-scratch accumulator branch.
    x_bf = x.astype(jnp.bfloat16)
    out_bf = jax.block_until_ready(feed_forward(x_bf, params))
    assert out_bf.dtype == jnp.bfloat16
    assert jnp.allclose(out_bf.astype(jnp.float32), ref, atol=1e-1, rtol=1e-1)

    # 5) Odd row count exercises row-tile balancing / row padding.
    x_odd = jax.random.normal(kx, (3, 13, d_model), dtype=jnp.float32)
    ref_odd = jnp.maximum(x_odd @ w1 + b1, 0.0) @ w2 + b2
    out_odd = jax.block_until_ready(feed_forward(x_odd, params_f32))
    assert out_odd.shape == (3, 13, d_model)
    assert jnp.allclose(out_odd, ref_odd, atol=1e-5, rtol=1e-5)

    print("KERNEL_OK")
</pallas_src>

<mosaic_0001>
module attributes {stable_mosaic.version = 11 : i64} {
  func.func @_ffn_kernel(%arg0: i32, %arg1: i32, %arg2: memref<8x128xf32, #tpu.memory_space<vmem>>, %arg3: memref<128x128xf32, #tpu.memory_space<vmem>>, %arg4: memref<1x128xf32, #tpu.memory_space<vmem>>, %arg5: memref<128x128xf32, #tpu.memory_space<vmem>>, %arg6: memref<1x128xf32, #tpu.memory_space<vmem>>, %arg7: memref<8x128xf32, #tpu.memory_space<vmem>>) attributes {dimension_semantics = [#tpu.dimension_semantics<parallel>, #tpu.dimension_semantics<arbitrary>], iteration_bounds = array<i64: 2, 1>, scalar_prefetch = 0 : i64, scratch_operands = 0 : i64, tpu.core_type = #tpu.core_type<tc>, window_params = [{transform_indices = @transform_0, window_bounds = array<i64: 8, 128>}, {transform_indices = @transform_1, window_bounds = array<i64: 128, 128>}, {transform_indices = @transform_2, window_bounds = array<i64: 1, 128>}, {transform_indices = @transform_3, window_bounds = array<i64: 128, 128>}, {pipeline_mode = #tpu.pipeline_mode<synchronous>, transform_indices = @transform_4, window_bounds = array<i64: 1, 128>}, {transform_indices = @transform_5, window_bounds = array<i64: 8, 128>}]} {
    %c0_i32 = arith.constant 0 : i32
    %0 = arith.cmpi eq, %arg1, %c0_i32 : i32
    %1 = arith.extui %0 : i1 to i32
    %c0_i32_0 = arith.constant 0 : i32
    %2 = arith.cmpi ne, %1, %c0_i32_0 : i32
    scf.if %2 {
      %c0_14 = arith.constant 0 : index
      %c0_15 = arith.constant 0 : index
      %16 = vector.load %arg6[%c0_14, %c0_15] : memref<1x128xf32, #tpu.memory_space<vmem>>, vector<1x128xf32>
      %17 = vector.shape_cast %16 : vector<1x128xf32> to vector<1x128xf32>
      %18 = vector.broadcast %17 : vector<1x128xf32> to vector<8x128xf32>
      %c0_16 = arith.constant 0 : index
      %c0_17 = arith.constant 0 : index
      %19 = vector.load %arg7[%c0_16, %c0_17] : memref<8x128xf32, #tpu.memory_space<vmem>>, vector<8x128xf32>
      tpu.vector_store %arg7[%c0_16, %c0_17], %18 {strides = array<i32>} : memref<8x128xf32, #tpu.memory_space<vmem>>, vector<8x128xf32>,
    } else {
    }
    %c0 = arith.constant 0 : index
    %c0_1 = arith.constant 0 : index
    %3 = vector.load %arg2[%c0, %c0_1] : memref<8x128xf32, #tpu.memory_space<vmem>>, vector<8x128xf32>
    %c0_2 = arith.constant 0 : index
    %c0_3 = arith.constant 0 : index
    %4 = vector.load %arg3[%c0_2, %c0_3] : memref<128x128xf32, #tpu.memory_space<vmem>>, vector<128x128xf32>
    %cst = arith.constant dense<0.000000e+00> : vector<8x128xf32>
    %5 = tpu.matmul %3, %4, %cst {dimension_numbers = #tpu.dot_dimension_numbers<[1], [0], [0], [1], [0, 0, 1, 1], [], []>} : vector<8x128xf32>, vector<128x128xf32>, vector<8x128xf32> -> vector<8x128xf32>
    %c0_4 = arith.constant 0 : index
    %c0_5 = arith.constant 0 : index
    %6 = vector.load %arg4[%c0_4, %c0_5] : memref<1x128xf32, #tpu.memory_space<vmem>>, vector<1x128xf32>
    %7 = vector.broadcast %6 : vector<1x128xf32> to vector<8x128xf32>
    %8 = arith.addf %5, %7 : vector<8x128xf32>
    %cst_6 = arith.constant 0.000000e+00 : f32
    %9 = vector.broadcast %cst_6 : f32 to vector<8x128xf32>
    %10 = arith.maximumf %8, %9 : vector<8x128xf32>
    %c0_7 = arith.constant 0 : index
    %c0_8 = arith.constant 0 : index
    %11 = vector.load %arg7[%c0_7, %c0_8] : memref<8x128xf32, #tpu.memory_space<vmem>>, vector<8x128xf32>
    %c0_9 = arith.constant 0 : index
    %c0_10 = arith.constant 0 : index
    %12 = vector.load %arg5[%c0_9, %c0_10] : memref<128x128xf32, #tpu.memory_space<vmem>>, vector<128x128xf32>
    %cst_11 = arith.constant dense<0.000000e+00> : vector<8x128xf32>
    %13 = tpu.matmul %10, %12, %cst_11 {dimension_numbers = #tpu.dot_dimension_numbers<[1], [0], [0], [1], [0, 0, 1, 1], [], []>} : vector<8x128xf32>, vector<128x128xf32>, vector<8x128xf32> -> vector<8x128xf32>
    %14 = arith.addf %11, %13 : vector<8x128xf32>
    %c0_12 = arith.constant 0 : index
    %c0_13 = arith.constant 0 : index
    %15 = vector.load %arg7[%c0_12, %c0_13] : memref<8x128xf32, #tpu.memory_space<vmem>>, vector<8x128xf32>
    tpu.vector_store %arg7[%c0_12, %c0_13], %14 {strides = array<i32>} : memref<8x128xf32, #tpu.memory_space<vmem>>, vector<8x128xf32>,
    return
  }
  func.func @transform_0(%arg0: i32, %arg1: i32) -> (i32, i32) {
    %c0_i32 = arith.constant 0 : i32
    %c0_i32_0 = arith.constant 0 : i32
    return %arg0, %c0_i32 : i32, i32
  }
  func.func @transform_1(%arg0: i32, %arg1: i32) -> (i32, i32) {
    %c0_i32 = arith.constant 0 : i32
    %c0_i32_0 = arith.constant 0 : i32
    return %c0_i32, %arg1 : i32, i32
  }
  func.func @transform_2(%arg0: i32, %arg1: i32) -> (i32, i32) {
    %c0_i32 = arith.constant 0 : i32
    %c0_i32_0 = arith.constant 0 : i32
    return %c0_i32, %arg1 : i32, i32
  }
  func.func @transform_3(%arg0: i32, %arg1: i32) -> (i32, i32) {
    %c0_i32 = arith.constant 0 : i32
    %c0_i32_0 = arith.constant 0 : i32
    return %arg1, %c0_i32 : i32, i32
  }
  func.func @transform_4(%arg0: i32, %arg1: i32) -> (i32, i32) {
    %c0_i32 = arith.constant 0 : i32
    %c0_i32_0 = arith.constant 0 : i32
    %c0_i32_1 = arith.constant 0 : i32
    return %c0_i32, %c0_i32_0 : i32, i32
  }
  func.func @transform_5(%arg0: i32, %arg1: i32) -> (i32, i32) {
    %c0_i32 = arith.constant 0 : i32
    %c0_i32_0 = arith.constant 0 : i32
    return %arg0, %c0_i32 : i32, i32
  }
}

</mosaic_0001>

<llo_original>
// kernel: _ffn_call.1
$region0: #{_ffn_call.1}
  #allocation0 [shape = 'u32[]', space=smem, size = 0x4, offset = 0x4, fixed_abs, tag = 'smem constant byte address 0x4 - core index']
  #allocation1 [shape = 'u32[72,128]{1,0:T(1,128)}', space=vmem, size = 0x9000, scoped, tag = 'internal scratch']
  %s0 = inlined_call_operand.vmem [shape: f32[16,128], index: 0, kind: input, shape index: {}]
  %s1 = inlined_call_operand.hbm [shape: f32[128,128], index: 1, kind: input, shape index: {}]
  %s2 = inlined_call_operand.vmem [shape: f32[1,128], index: 2, kind: input, shape index: {}]
  %s3 = inlined_call_operand.hbm [shape: f32[128,128], index: 3, kind: input, shape index: {}]
  %s4 = inlined_call_operand.vmem [shape: f32[1,128], index: 4, kind: input, shape index: {}]
  %s5 = inlined_call_operand.vmem [shape: f32[16,128], index: 5, kind: output, shape index: {}]
  %s6 = sld [smem:[#allocation0]]
  $region65: #{_ffn_call.1} parent=0
    _
  %s8 = ssub.s32 1, %s6
  %s9 = scalar_select 0, %s8, %s6
  $region1: #{_ffn_call.1} parent=0
    #allocation2 [shape = 'u8[65536]{0}', space=vmem, size = 0x10000, scoped, tag = 'input window, operand 1, single buffered']
    #allocation3 [shape = 's32[2]{0}', space=sflag, size = 0x8, scoped, tag = 'scoped memory for _ffn_call.1']
    #allocation4 [shape = 'u8[65536]{0}', space=vmem, size = 0x10000, scoped, tag = 'input window, operand 3, single buffered']
    #allocation5 [shape = 's32[1]{0}', space=sflag, size = 0x4, scoped, tag = 'scoped memory for _ffn_call.1']
    %10 = vsyncpa [#allocation3], 0
    %11 = vsyncpa [#allocation5], 0
    loop: start=0, step=1, limit=4
    $region2: #{_ffn_call.1} parent=1 // loop_pre_header
      _
    $region3: #{_ffn_call.1} parent=1 // loop_header
      %s13 = sphi 0, %s17
      %p14 = scmp.ge.s32.totalorder %s13, 4
      %s20 = sphi 0, %s32
      %s21 = sphi 0, %s28
      %s22 = sphi 0, %s20
      %s23 = sphi 0, %s21
      %s24 = sphi 0, %s22
      %s25 = sphi 0, %s23
      %s35 = sphi 0, %s37
      %s38 = sphi 0, %s35
      %s39 = sphi 0, %s38
      %s55 = sphi 0, %s39
      %s61 = sphi 0, %s63
      %s64 = sphi 0, %s61
      %s65 = sphi 0, %s64
      %s81 = sphi 0, %s65
      %s87 = sphi 0, %s89
      %s90 = sphi 0, %s87
      %s91 = sphi 0, %s90
      %s107 = sphi 0, %s91
      %s113 = sphi 0, %s115
      %s116 = sphi 0, %s113
      %s117 = sphi 0, %s116
      %s133 = sphi 0, %s117
      %s137 = sphi 0, %s137
      %s139 = sphi 0, %s137
      %s140 = sphi 0, %s139
      %s154 = sphi 0, %s140
      %s160 = sphi 0, %s162
      %s163 = sphi 0, %s160
      %s164 = sphi 0, %s163
      %s180 = sphi 0, %s164
    $region4: #{_ffn_call.1} parent=1 // loop_header_branch
      %16 = sbr.rel (%p14) target = $region8
    $region5: #{_ffn_call.1} parent=1 // loop_body
      %s18 = ssub.s32 %s13, 1
      %s19 = ssub.s32 %s13, 2
      %s26 = sadd.s32 1, %s21
      %p27 = scmp.ge.s32.totalorder %s26, 1
      %s28 = scalar_select %p27, 0, %s26
      %s29 = sadd.s32 1, %s20
      %s30 = scalar_select %p27, %s29, %s20
      %p31 = scmp.ge.s32.totalorder %s30, 2
      %s32 = scalar_select %p31, 0, %s30
      %s33 = ssub.s32 %s20, %s32
      %p34 = scmp.eq.s32.totalorder %s33, 0
      %s36 = sadd.s32 %s35, 1
      %s37 = scalar_select %p34, %s35, %s36
      %p40 = pneg %p34
      %p41 = scmp.eq.s32.totalorder %s13, 1
      %p42 = por %p40, %p41
      %p43 = scmp.ne.s32.totalorder %s35, %s38
      %p44 = scmp.eq.s32.totalorder %s13, 0
      %p45 = por %p43, %p44
      %p46 = scmp.ne.s32.totalorder %s35, %s38
      %p47 = scmp.eq.s32.totalorder %s18, 1
      %p48 = por %p46, %p47
      %p49 = scmp.ne.s32.totalorder %s38, %s39
      %p50 = scmp.eq.s32.totalorder %s18, 0
      %p51 = por %p49, %p50
      %p52 = scmp.ne.s32.totalorder %s38, %s39
      %p53 = scmp.eq.s32.totalorder %s19, 1
      %p54 = por %p52, %p53
      %p56 = scmp.ne.s32.totalorder %s39, %s55
      %p57 = scmp.eq.s32.totalorder %s19, 0
      %p58 = por %p56, %p57
      %s59 = ssub.s32 %s21, %s28
      %p60 = scmp.eq.s32.totalorder %s59, 0
      %s62 = sadd.s32 %s61, 1
      %s63 = scalar_select %p60, %s61, %s62
      %p66 = pneg %p60
      %p67 = scmp.eq.s32.totalorder %s13, 1
      %p68 = por %p66, %p67
      %p69 = scmp.ne.s32.totalorder %s61, %s64
      %p70 = scmp.eq.s32.totalorder %s13, 0
      %p71 = por %p69, %p70
      %p72 = scmp.ne.s32.totalorder %s61, %s64
      %p73 = scmp.eq.s32.totalorder %s18, 1
      %p74 = por %p72, %p73
      %p75 = scmp.ne.s32.totalorder %s64, %s65
      %p76 = scmp.eq.s32.totalorder %s18, 0
      %p77 = por %p75, %p76
      %p78 = scmp.ne.s32.totalorder %s64, %s65
      %p79 = scmp.eq.s32.totalorder %s19, 1
      %p80 = por %p78, %p79
      %p82 = scmp.ne.s32.totalorder %s65, %s81
      %p83 = scmp.eq.s32.totalorder %s19, 0
      %p84 = por %p82, %p83
      %s85 = ssub.s32 %s21, %s28
      %p86 = scmp.eq.s32.totalorder %s85, 0
      %s88 = sadd.s32 %s87, 1
      %s89 = scalar_select %p86, %s87, %s88
      %p92 = pneg %p86
      %p93 = scmp.eq.s32.totalorder %s13, 1
      %p94 = por %p92, %p93
      %p95 = scmp.ne.s32.totalorder %s87, %s90
      %p96 = scmp.eq.s32.totalorder %s13, 0
      %p97 = por %p95, %p96
      %p98 = scmp.ne.s32.totalorder %s87, %s90
      %p99 = scmp.eq.s32.totalorder %s18, 1
      %p100 = por %p98, %p99
      %p101 = scmp.ne.s32.totalorder %s90, %s91
      %p102 = scmp.eq.s32.totalorder %s18, 0
      %p103 = por %p101, %p102
      %p104 = scmp.ne.s32.totalorder %s90, %s91
      %p105 = scmp.eq.s32.totalorder %s19, 1
      %p106 = por %p104, %p105
      %p108 = scmp.ne.s32.totalorder %s91, %s107
      %p109 = scmp.eq.s32.totalorder %s19, 0
      %p110 = por %p108, %p109
      %s111 = ssub.s32 %s21, %s28
      %p112 = scmp.eq.s32.totalorder %s111, 0
      %s114 = sadd.s32 %s113, 1
      %s115 = scalar_select %p112, %s113, %s114
      %p118 = pneg %p112
      %p119 = scmp.eq.s32.totalorder %s13, 1
      %p120 = por %p118, %p119
      %p121 = scmp.ne.s32.totalorder %s113, %s116
      %p122 = scmp.eq.s32.totalorder %s13, 0
      %p123 = por %p121, %p122
      %p124 = scmp.ne.s32.totalorder %s113, %s116
      %p125 = scmp.eq.s32.totalorder %s18, 1
      %p126 = por %p124, %p125
      %p127 = scmp.ne.s32.totalorder %s116, %s117
      %p128 = scmp.eq.s32.totalorder %s18, 0
      %p129 = por %p127, %p128
      %p130 = scmp.ne.s32.totalorder %s116, %s117
      %p131 = scmp.eq.s32.totalorder %s19, 1
      %p132 = por %p130, %p131
      %p134 = scmp.ne.s32.totalorder %s117, %s133
      %p135 = scmp.eq.s32.totalorder %s19, 0
      %p136 = por %p134, %p135
      %s138 = sadd.s32 %s137, 1
      %p141 = scmp.eq.s32.totalorder %s13, 1
      %p142 = scmp.ne.s32.totalorder %s137, %s139
      %p143 = scmp.eq.s32.totalorder %s13, 0
      %p144 = por %p142, %p143
      %p145 = scmp.ne.s32.totalorder %s137, %s139
      %p146 = scmp.eq.s32.totalorder %s18, 1
      %p147 = por %p145, %p146
      %p148 = scmp.ne.s32.totalorder %s139, %s140
      %p149 = scmp.eq.s32.totalorder %s18, 0
      %p150 = por %p148, %p149
      %p151 = scmp.ne.s32.totalorder %s139, %s140
      %p152 = scmp.eq.s32.totalorder %s19, 1
      %p153 = por %p151, %p152
      %p155 = scmp.ne.s32.totalorder %s140, %s154
      %p156 = scmp.eq.s32.totalorder %s19, 0
      %p157 = por %p155, %p156
      %s158 = ssub.s32 %s20, %s32
      %p159 = scmp.eq.s32.totalorder %s158, 0
      %s161 = sadd.s32 %s160, 1
      %s162 = scalar_select %p159, %s160, %s161
      %p165 = pneg %p159
      %p166 = scmp.eq.s32.totalorder %s13, 1
      %p167 = por %p165, %p166
      %p168 = scmp.ne.s32.totalorder %s160, %s163
      %p169 = scmp.eq.s32.totalorder %s13, 0
      %p170 = por %p168, %p169
      %p171 = scmp.ne.s32.totalorder %s160, %s163
      %p172 = scmp.eq.s32.totalorder %s18, 1
      %p173 = por %p171, %p172
      %p174 = scmp.ne.s32.totalorder %s163, %s164
      %p175 = scmp.eq.s32.totalorder %s18, 0
      %p176 = por %p174, %p175
      %p177 = scmp.ne.s32.totalorder %s163, %s164
      %p178 = scmp.eq.s32.totalorder %s19, 1
      %p179 = por %p177, %p178
      %p181 = scmp.ne.s32.totalorder %s164, %s180
      %p182 = scmp.eq.s32.totalorder %s19, 0
      %p183 = por %p181, %p182
      %p184 = scmp.le.s32.totalorder 1, %s13
      %p185 = scmp.lt.s32.totalorder %s13, 3
      %p186 = pnand %p184, %p185
      %p187 = pneg %p186
      // Predicated region
      $region9: #{_ffn_call.1} parent=5 // pred_check
        _
      $region10: #{_ffn_call.1} parent=5 // pred_check_branch
        %189 = sbr.rel (%p186) target = $region12
      $region11: #{_ffn_call.1} parent=5 // pred_region
        %s190 = ssub.s32 %s13, 1
        // Predicated region
        $region13: #{_ffn_call.1} parent=11 // pred_check
          %p191 = pneg %p77
        $region14: #{_ffn_call.1} parent=11 // pred_check_branch
          %193 = sbr.rel (%p191) target = $region16
        $region15: #{_ffn_call.1} parent=11 // pred_region
          %195 = vsyncadd [#allocation3], 0
          %s196 = smul.addr %s23, 8
          %s197 = scalar_lea.hbm %s1, %s196
          %s198 = sshll.u32 %s197, 4
          %s199 = int_to_ptr.hbm [resolvable:$true] %s198
          %s200 = sshll.u32 [#allocation2], 4
          %s201 = int_to_ptr.vmem [resolvable:$true] %s200
          %206 = dma.hbm_to_vmem [thread:$0]  %s199, 2048, %s201, [#allocation3], 128, 128, 8
        $region16: #{_ffn_call.1} parent=11 // pred_fallthru
          _
        // Predicated region
        $region17: #{_ffn_call.1} parent=11 // pred_check
          %p207 = pneg %p103
        $region18: #{_ffn_call.1} parent=11 // pred_check_branch
          %209 = sbr.rel (%p207) target = $region20
        $region19: #{_ffn_call.1} parent=11 // pred_region
          %p210 = scmp.lt.s32.totalorder %s23, 0
          %s211 = scalar_select %p210, %s23, 0
          %s212 = scalar_lea.vmem %s2, %s211
        $region20: #{_ffn_call.1} parent=11 // pred_fallthru
          _
        // Predicated region
        $region21: #{_ffn_call.1} parent=11 // pred_check
          %p213 = pneg %p129
        $region22: #{_ffn_call.1} parent=11 // pred_check_branch
          %215 = sbr.rel (%p213) target = $region24
        $region23: #{_ffn_call.1} parent=11 // pred_region
          %s216 = smul.u32 16, %s23
          %218 = vsyncadd [#allocation5], 0
          %s219 = smul.addr %s216, 8
          %s220 = scalar_lea.hbm %s3, %s219
          %s221 = sshll.u32 %s220, 4
          %s222 = int_to_ptr.hbm [resolvable:$true] %s221
          %s223 = sshll.u32 [#allocation4], 4
          %s224 = int_to_ptr.vmem [resolvable:$true] %s223
          %229 = dma.hbm_to_vmem [thread:$0]  %s222, 2048, %s224, [#allocation5], 128, 128, 8
        $region24: #{_ffn_call.1} parent=11 // pred_fallthru
          _
        // Predicated region
        $region25: #{_ffn_call.1} parent=11 // pred_check
          %p230 = pneg %p150
        $region26: #{_ffn_call.1} parent=11 // pred_check_branch
          %232 = sbr.rel (%p230) target = $region28
        $region27: #{_ffn_call.1} parent=11 // pred_region
          _
        $region28: #{_ffn_call.1} parent=11 // pred_fallthru
          _
      $region12: #{_ffn_call.1} parent=5 // pred_fallthru
        _
      %p233 = scmp.lt.s32.totalorder %s13, 2
      // Predicated region
      $region29: #{_ffn_call.1} parent=5 // pred_check
        %p234 = pneg %p233
      $region30: #{_ffn_call.1} parent=5 // pred_check_branch
        %236 = sbr.rel (%p234) target = $region32
      $region31: #{_ffn_call.1} parent=5 // pred_region
        // Predicated region
        $region33: #{_ffn_call.1} parent=31 // pred_check
          %p237 = pneg %p45
        $region34: #{_ffn_call.1} parent=31 // pred_check_branch
          %239 = sbr.rel (%p237) target = $region36
        $region35: #{_ffn_call.1} parent=31 // pred_region
          %p240 = scmp.lt.s32.totalorder %s20, 1
          %s241 = scalar_select %p240, %s20, 1
          %s242 = smul.addr %s241, 8
          %s243 = scalar_lea.vmem %s0, %s242
        $region36: #{_ffn_call.1} parent=31 // pred_fallthru
          _
      $region32: #{_ffn_call.1} parent=5 // pred_fallthru
        _
      %p244 = scmp.le.s32.totalorder 1, %s13
      %p245 = scmp.lt.s32.totalorder %s13, 3
      %p246 = pnand %p244, %p245
      %p247 = pneg %p246
      // Predicated region
      $region37: #{_ffn_call.1} parent=5 // pred_check
        _
      $region38: #{_ffn_call.1} parent=5 // pred_check_branch
        %249 = sbr.rel (%p246) target = $region40
      $region39: #{_ffn_call.1} parent=5 // pred_region
        %s250 = ssub.s32 %s13, 1
        // Predicated region
        $region41: #{_ffn_call.1} parent=39 // pred_check
          %p251 = pneg %p77
        $region42: #{_ffn_call.1} parent=39 // pred_check_branch
          %253 = sbr.rel (%p251) target = $region44
        $region43: #{_ffn_call.1} parent=39 // pred_region
          %255 = dma.done [#allocation3], 2048
        $region44: #{_ffn_call.1} parent=39 // pred_fallthru
          _
        // Predicated region
        $region45: #{_ffn_call.1} parent=39 // pred_check
          %p256 = pneg %p129
        $region46: #{_ffn_call.1} parent=39 // pred_check_branch
          %258 = sbr.rel (%p256) target = $region48
        $region47: #{_ffn_call.1} parent=39 // pred_region
          %260 = dma.done [#allocation5], 2048
        $region48: #{_ffn_call.1} parent=39 // pred_fallthru
          _
        %p261 = scmp.lt.s32.totalorder %s22, 1
        %s262 = scalar_select %p261, %s22, 1
        %s263 = smul.addr %s262, 8
        %s264 = scalar_lea.vmem %s0, %s263
        %p265 = pneg %p51
        %p266 = pneg %p48
        %p267 = pneg %p77
        %p268 = pneg %p74
        %p269 = scmp.lt.s32.totalorder %s23, 0
        %s270 = scalar_select %p269, %s23, 0
        %s271 = scalar_lea.vmem %s2, %s270
        %p272 = pneg %p103
        %p273 = pneg %p100
        %p274 = pneg %p129
        %p275 = pneg %p126
        %p276 = pneg %p150
        %p277 = pneg %p147
        %p278 = pneg %p176
        %p279 = pneg %p173
        %p280 = scmp.lt.s32.totalorder %s22, 1
        %s281 = scalar_select %p280, %s22, 1
        %s282 = smul.addr %s281, 8
        %s283 = scalar_lea.vmem %s5, %s282
        %p284 = scmp.lt.s32.totalorder %s22, 1
        %s285 = scalar_select %p284, %s22, 1
        %s286 = smul.addr %s285, 8
        %s287 = scalar_lea.vmem %s0, %s286
        %p288 = scmp.lt.s32.totalorder %s23, 0
        %s289 = scalar_select %p288, %s23, 0
        %s290 = scalar_lea.vmem %s2, %s289
        %s291 = smul.u32 16, %s23
        %p292 = scmp.lt.s32.totalorder %s22, 1
        %s293 = scalar_select %p292, %s22, 1
        %s294 = smul.addr %s293, 8
        %s295 = scalar_lea.vmem %s5, %s294
        %p296 = scmp.eq.s32.totalorder %s23, 0
        // Predicated region
        $region49: #{_ffn_call.1} parent=39 // pred_check
          %p297 = pneg %p296
        $region50: #{_ffn_call.1} parent=39 // pred_check_branch
          %299 = sbr.rel (%p297) target = $region52
        $region51: #{_ffn_call.1} parent=39 // pred_region
          %v300 = vld [vmem:[%s4] sm:$0x1]
          %v302 = vperm.slane %v300, 0
          %304 = vst [vmem:[%s295] sm:$0xff] %v302
        $region52: #{_ffn_call.1} parent=39 // pred_fallthru
          _
        %v305 = vld [vmem:[%s287] sm:$0xff]
        %v306 = vld [vmem:[#allocation2] sm:$0xff]
        %v307 = vld [vmem:[#allocation2 + $0x8] sm:$0xff]
        %v308 = vld [vmem:[#allocation2 + $0x10] sm:$0xff]
        %v309 = vld [vmem:[#allocation2 + $0x18] sm:$0xff]
        %v310 = vld [vmem:[#allocation2 + $0x20] sm:$0xff]
        %v311 = vld [vmem:[#allocation2 + $0x28] sm:$0xff]
        %v312 = vld [vmem:[#allocation2 + $0x30] sm:$0xff]
        %v313 = vld [vmem:[#allocation2 + $0x38] sm:$0xff]
        %v314 = vld [vmem:[#allocation2 + $0x40] sm:$0xff]
        %v315 = vld [vmem:[#allocation2 + $0x48] sm:$0xff]
        %v316 = vld [vmem:[#allocation2 + $0x50] sm:$0xff]
        %v317 = vld [vmem:[#allocation2 + $0x58] sm:$0xff]
        %v318 = vld [vmem:[#allocation2 + $0x60] sm:$0xff]
        %v319 = vld [vmem:[#allocation2 + $0x68] sm:$0xff]
        %v320 = vld [vmem:[#allocation2 + $0x70] sm:$0xff]
        %v321 = vld [vmem:[#allocation2 + $0x78] sm:$0xff]
        %v322 = vld [vmem:[%s290] sm:$0x1]
        %v324 = vperm.slane %v322, 0
        %326 = vmatpush.msra.mxu0 %v321
        %327 = vmatpush.msra.mxu0 %v320
        %328 = vmatpush.msra.mxu0 %v319
        %329 = vmatpush.msra.mxu0 %v318
        %330 = vmatpush.msra.mxu0 %v317
        %331 = vmatpush.msra.mxu0 %v316
        %332 = vmatpush.msra.mxu0 %v315
        %333 = vmatpush.msra.mxu0 %v314
        %334 = vmatpush.msra.mxu0 %v313
        %335 = vmatpush.msra.mxu0 %v312
        %336 = vmatpush.msra.mxu0 %v311
        %337 = vmatpush.msra.mxu0 %v310
        %338 = vmatpush.msra.mxu0 %v309
        %339 = vmatpush.msra.mxu0 %v308
        %340 = vmatpush.msra.mxu0 %v307
        %341 = vmatpush.msra.mxu0 %v306
        %342 = vmatmul.f32.gmra.mxu0 %v305
        %v343 = vpop.f32.mrf.mxu0
        %v344 = vadd.f32 %v324, %v343
        %345 = vdwg.mxu0
        %v346 = vmax.f32 %v344, 0.0
        %v347 = vld [vmem:[%s295] sm:$0xff]
        %v348 = vld [vmem:[#allocation4] sm:$0xff]
        %v349 = vld [vmem:[#allocation4 + $0x8] sm:$0xff]
        %v350 = vld [vmem:[#allocation4 + $0x10] sm:$0xff]
        %v351 = vld [vmem:[#allocation4 + $0x18] sm:$0xff]
        %v352 = vld [vmem:[#allocation4 + $0x20] sm:$0xff]
        %v353 = vld [vmem:[#allocation4 + $0x28] sm:$0xff]
        %v354 = vld [vmem:[#allocation4 + $0x30] sm:$0xff]
        %v355 = vld [vmem:[#allocation4 + $0x38] sm:$0xff]
        %v356 = vld [vmem:[#allocation4 + $0x40] sm:$0xff]
        %v357 = vld [vmem:[#allocation4 + $0x48] sm:$0xff]
        %v358 = vld [vmem:[#allocation4 + $0x50] sm:$0xff]
        %v359 = vld [vmem:[#allocation4 + $0x58] sm:$0xff]
        %v360 = vld [vmem:[#allocation4 + $0x60] sm:$0xff]
        %v361 = vld [vmem:[#allocation4 + $0x68] sm:$0xff]
        %v362 = vld [vmem:[#allocation4 + $0x70] sm:$0xff]
        %v363 = vld [vmem:[#allocation4 + $0x78] sm:$0xff]
        %364 = vmatpush.msra.mxu0 %v363
        %365 = vmatpush.msra.mxu0 %v362
        %366 = vmatpush.msra.mxu0 %v361
        %367 = vmatpush.msra.mxu0 %v360
        %368 = vmatpush.msra.mxu0 %v359
        %369 = vmatpush.msra.mxu0 %v358
        %370 = vmatpush.msra.mxu0 %v357
        %371 = vmatpush.msra.mxu0 %v356
        %372 = vmatpush.msra.mxu0 %v355
        %373 = vmatpush.msra.mxu0 %v354
        %374 = vmatpush.msra.mxu0 %v353
        %375 = vmatpush.msra.mxu0 %v352
        %376 = vmatpush.msra.mxu0 %v351
        %377 = vmatpush.msra.mxu0 %v350
        %378 = vmatpush.msra.mxu0 %v349
        %379 = vmatpush.msra.mxu0 %v348
        %380 = vmatmul.f32.gmra.mxu0 %v346
        %v381 = vpop.f32.mrf.mxu0
        %v382 = vadd.f32 0.0, %v381
        %383 = vdwg.mxu0
        %v384 = vadd.f32 %v347, %v382
        %385 = vst [vmem:[%s295] sm:$0xff] %v384
        %p386 = scmp.lt.s32.totalorder %s22, 1
        %s387 = scalar_select %p386, %s22, 1
        %s388 = smul.addr %s387, 8
        %s389 = scalar_lea.vmem %s5, %s388
        // Predicated region
        $region53: #{_ffn_call.1} parent=39 // pred_check
          %p390 = pneg %p173
        $region54: #{_ffn_call.1} parent=39 // pred_check_branch
          %392 = sbr.rel (%p390) target = $region56
        $region55: #{_ffn_call.1} parent=39 // pred_region
          _
        $region56: #{_ffn_call.1} parent=39 // pred_fallthru
          _
      $region40: #{_ffn_call.1} parent=5 // pred_fallthru
        _
      %p393 = scmp.le.s32.totalorder 2, %s13
      // Predicated region
      $region57: #{_ffn_call.1} parent=5 // pred_check
        %p394 = pneg %p393
      $region58: #{_ffn_call.1} parent=5 // pred_check_branch
        %396 = sbr.rel (%p394) target = $region60
      $region59: #{_ffn_call.1} parent=5 // pred_region
        %s397 = ssub.s32 %s13, 2
        // Predicated region
        $region61: #{_ffn_call.1} parent=59 // pred_check
          %p398 = pneg %p179
        $region62: #{_ffn_call.1} parent=59 // pred_check_branch
          %400 = sbr.rel (%p398) target = $region64
        $region63: #{_ffn_call.1} parent=59 // pred_region
          %p401 = scmp.lt.s32.totalorder %s24, 1
          %s402 = scalar_select %p401, %s24, 1
          %s403 = smul.addr %s402, 8
          %s404 = scalar_lea.vmem %s5, %s403
        $region64: #{_ffn_call.1} parent=59 // pred_fallthru
          _
      $region60: #{_ffn_call.1} parent=5 // pred_fallthru
        _
    $region6: #{_ffn_call.1} parent=1 // loop_footer
      %s17 = sadd.s32 1, %s13
    $region7: #{_ffn_call.1} parent=1 // loop_footer_branch
      %12 = sbr.rel target = $region3
    $region8: #{_ffn_call.1} parent=1 // loop_exit
      _
    %405 = vsyncpa [#allocation3], 1
    %s406 = scalar_lea.sflag [#allocation3], 1
    %407 = vsyncpa %s406, 1
    %408 = vsyncpa [#allocation5], 1

</llo_original>
